<compile_context>
chip_gen: v6e
topology: v6e:2x2x1
jax: 0.10.0
libtpu: 0.0.40
codegen_flags: <defaults>
</compile_context>

<pallas_src>
import jax
import jax.numpy as jnp
import numpy as np
from jax.experimental import pallas as pl
from jax.experimental.pallas import tpu as pltpu

EPS = 1e-5
SHIFTS = [(dy, dx) for dy in (-1, 0, 1) for dx in (-1, 0, 1)]


def _make_kernel(H, W):
    del H  # only W is needed for the flattened-index shift

    def kernel(x_ref, mask_ref,
               s1_ref, b1_ref, w1_ref,
               s2_ref, b2_ref, w2_ref,
               s3_ref, b3_ref, w3_ref,
               out_ref):
        x = x_ref[0]                                                   # (Cin, HW) f32

        # bn1 -> relu -> conv1 (1x1):  (Cmid, Cin) @ (Cin, HW)
        h = jnp.maximum(x * s1_ref[...] + b1_ref[...], 0.0)
        h = jnp.dot(w1_ref[...], h.astype(jnp.bfloat16),
                    preferred_element_type=jnp.float32)                # (Cmid, HW)

        # bn2 -> relu (f32 elementwise)
        h = jnp.maximum(h * s2_ref[...] + b2_ref[...], 0.0)

        # conv2 (3x3, stride=1, pad=1): one im2col matmul with K = 9*Cmid.
        masks = mask_ref[...]                                          # (9, HW)
        taps = []
        for k, (dy, dx) in enumerate(SHIFTS):
            s = dy * W + dx
            if s == 0:
                taps.append(h)                                         # center: no roll, no mask
            else:
                taps.append(jnp.roll(h, -s, axis=1) * masks[k:k + 1, :])
        im2col = jnp.concatenate(taps, axis=0)                         # (9*Cmid, HW) f32
        acc = jnp.dot(w2_ref[...], im2col.astype(jnp.bfloat16),
                      preferred_element_type=jnp.float32)              # (Cmid, HW)

        # Fused [bn3 -> relu -> conv3] + [shortcut bn -> relu -> conv1x1]:
        # concat([acc, x]) along channels, fused scale/shift, fused (Cout, Cmid+Cin) weight.
        pre = jnp.concatenate([acc, x], axis=0)                        # (Cmid+Cin, HW)
        h3 = jnp.maximum(pre * s3_ref[...] + b3_ref[...], 0.0)
        out = jnp.dot(w3_ref[...], h3.astype(jnp.bfloat16),
                      preferred_element_type=jnp.float32)              # (Cout, HW)
        out_ref[0] = out

    return kernel


def _fold_bn(gamma, beta, mean, var):
    scale = gamma / jnp.sqrt(var + EPS)
    shift = beta - mean * scale
    return scale.astype(jnp.float32)[:, None], shift.astype(jnp.float32)[:, None]   # (C, 1)


def bottleneck_block(x_nchw, params):
    N, Cin, H, W = x_nchw.shape
    HW = H * W
    Cmid = params["conv1_w"].shape[0]
    Cout = params["conv3_w"].shape[0]

    # NCHW -> (N, C, H*W): pure reshape (lane dim = HW stays dense), no HBM transpose.
    x2d = x_nchw.reshape(N, Cin, HW)

    s1, b1 = _fold_bn(*params["bn1"])       # (Cin, 1)
    s2, b2 = _fold_bn(*params["bn2"])       # (Cmid, 1)
    s3, b3 = _fold_bn(*params["bn3"])       # (Cmid, 1)
    ss, bs = _fold_bn(*params["bn_sc"])     # (Cin, 1)

    # Weights in "W @ x" form; bf16 for the MXU, f32 accumulation in-kernel.
    w1 = params["conv1_w"][:, :, 0, 0].astype(jnp.bfloat16)                       # (Cmid, Cin)
    w2 = (jnp.transpose(params["conv2_w"], (0, 2, 3, 1))
          .reshape(Cmid, 9 * Cmid).astype(jnp.bfloat16))                          # (Cmid, 9*Cmid)
    w3 = params["conv3_w"][:, :, 0, 0]                                            # (Cout, Cmid)
    ws = params["short_w"][:, :, 0, 0]                                            # (Cout, Cin)
    w3f = jnp.concatenate([w3, ws], axis=1).astype(jnp.bfloat16)                  # (Cout, Cmid+Cin)
    s3f = jnp.concatenate([s3, ss], axis=0)                                       # (Cmid+Cin, 1)
    b3f = jnp.concatenate([b3, bs], axis=0)                                       # (Cmid+Cin, 1)

    # Lane-dense edge-validity masks for the 9 taps of the 3x3 conv: (9, HW).
    ii, jj = np.meshgrid(np.arange(H), np.arange(W), indexing="ij")
    masks_np = np.stack(
        [((ii + dy >= 0) & (ii + dy < H) & (jj + dx >= 0) & (jj + dx < W))
         .reshape(HW).astype(np.float32) for dy, dx in SHIFTS], axis=0)
    masks = jnp.asarray(masks_np)                                                 # (9, HW)

    def full(shape):
        return pl.BlockSpec(shape, lambda n, _nd=len(shape): (0,) * _nd)

    flops = 2 * N * HW * (Cin * Cmid + 9 * Cmid * Cmid + (Cmid + Cin) * Cout)
    bytes_accessed = (4 * N * HW * (Cin + Cout)                 # x in + out
                      + 4 * int(masks.size)                      # masks
                      + 2 * int(w1.size + w2.size + w3f.size)    # bf16 weights
                      + 4 * 2 * (Cin + Cmid + (Cmid + Cin)))     # folded BN vectors

    out2d = pl.pallas_call(
        _make_kernel(H, W),
        out_shape=jax.ShapeDtypeStruct((N, Cout, HW), jnp.float32),
        grid=(N,),
        in_specs=[
            pl.BlockSpec((1, Cin, HW), lambda n: (n, 0, 0)),       # x, one batch element/step
            full((9, HW)),                                         # conv2 edge masks
            full((Cin, 1)), full((Cin, 1)), full((Cmid, Cin)),     # bn1 scale/shift, conv1
            full((Cmid, 1)), full((Cmid, 1)), full((Cmid, 9 * Cmid)),          # bn2, conv2 (im2col)
            full((Cmid + Cin, 1)), full((Cmid + Cin, 1)), full((Cout, Cmid + Cin)),  # fused bn3/bn_sc, conv3||shortcut
        ],
        out_specs=pl.BlockSpec((1, Cout, HW), lambda n: (n, 0, 0)),
        compiler_params=pltpu.CompilerParams(
            dimension_semantics=("parallel",),
            vmem_limit_bytes=32 * 1024 * 1024),
        cost_estimate=pl.CostEstimate(flops=flops, transcendentals=0,
                                      bytes_accessed=bytes_accessed),
    )(x2d, masks, s1, b1, w1, s2, b2, w2, s3f, b3f, w3f)

    # (N, Cout, H*W) -> NCHW (pure reshape).
    return out2d.reshape(N, Cout, H, W)


def reference(x, params):
    """Pure-JAX NCHW reference mirroring the PyTorch forward (eval-mode BN, f32)."""
    def bn(y, g, b, m, v):
        g, b, m, v = (t[None, :, None, None] for t in (g, b, m, v))
        return (y - m) / jnp.sqrt(v + EPS) * g + b

    def conv(y, w, pad):
        return jax.lax.conv_general_dilated(
            y, w, window_strides=(1, 1), padding=[(pad, pad), (pad, pad)],
            dimension_numbers=("NCHW", "OIHW", "NCHW"))

    out = jnp.maximum(bn(x, *params["bn1"]), 0.0)
    out = conv(out, params["conv1_w"], 0)
    out = jnp.maximum(bn(out, *params["bn2"]), 0.0)
    out = conv(out, params["conv2_w"], 1)
    out = jnp.maximum(bn(out, *params["bn3"]), 0.0)
    out = conv(out, params["conv3_w"], 0)
    sc = jnp.maximum(bn(x, *params["bn_sc"]), 0.0)
    sc = conv(sc, params["short_w"], 0)
    return out + sc


if __name__ == "__main__":
    # BottleneckBlock(inplanes=4, planes=16, stride=1): shortcut is BN->ReLU->conv1x1.
    N, Cin, H, W = 2, 4, 16, 16
    planes = 16
    Cmid, Cout = planes // 4, planes

    key = jax.random.PRNGKey(0)
    ks = jax.random.split(key, 9)

    def bn_params(k, c):
        k1, k2, k3, k4 = jax.random.split(k, 4)
        gamma = 1.0 + 0.1 * jax.random.normal(k1, (c,), jnp.float32)
        beta = 0.1 * jax.random.normal(k2, (c,), jnp.float32)
        mean = 0.1 * jax.random.normal(k3, (c,), jnp.float32)
        var = jax.random.uniform(k4, (c,), jnp.float32, minval=0.5, maxval=1.5)
        return (gamma, beta, mean, var)

    params = {
        "conv1_w": 0.2 * jax.random.normal(ks[0], (Cmid, Cin, 1, 1), jnp.float32),
        "conv2_w": 0.2 * jax.random.normal(ks[1], (Cmid, Cmid, 3, 3), jnp.float32),
        "conv3_w": 0.2 * jax.random.normal(ks[2], (Cout, Cmid, 1, 1), jnp.float32),
        "short_w": 0.2 * jax.random.normal(ks[3], (Cout, Cin, 1, 1), jnp.float32),
        "bn1": bn_params(ks[4], Cin),
        "bn2": bn_params(ks[5], Cmid),
        "bn3": bn_params(ks[6], Cmid),
        "bn_sc": bn_params(ks[7], Cin),
    }

    x = jax.random.normal(ks[8], (N, Cin, H, W), jnp.float32)

    out = jax.block_until_ready(bottleneck_block(x, params))
    ref = jax.block_until_ready(reference(x, params))

    assert out.shape == (N, Cout, H, W), out.shape
    # Tolerance slightly relaxed vs the pure-f32 version because MXU operands are bf16
    # (accumulation is still f32 via preferred_element_type).
    if not np.allclose(np.asarray(out), np.asarray(ref), atol=3e-2, rtol=3e-2):
        raise AssertionError("Pallas kernel output does not match reference")
    print("KERNEL_OK")
</pallas_src>

<mosaic_0001>
module attributes {stable_mosaic.version = 11 : i64} {
  func.func @kernel(%arg0: i32, %arg1: memref<1x4x256xf32, #tpu.memory_space<vmem>>, %arg2: memref<9x256xf32, #tpu.memory_space<vmem>>, %arg3: memref<4x1xf32, #tpu.memory_space<vmem>>, %arg4: memref<4x1xf32, #tpu.memory_space<vmem>>, %arg5: memref<4x4xbf16, #tpu.memory_space<vmem>>, %arg6: memref<4x1xf32, #tpu.memory_space<vmem>>, %arg7: memref<4x1xf32, #tpu.memory_space<vmem>>, %arg8: memref<4x36xbf16, #tpu.memory_space<vmem>>, %arg9: memref<8x1xf32, #tpu.memory_space<vmem>>, %arg10: memref<8x1xf32, #tpu.memory_space<vmem>>, %arg11: memref<16x8xbf16, #tpu.memory_space<vmem>>, %arg12: memref<1x16x256xf32, #tpu.memory_space<vmem>>) attributes {dimension_semantics = [#tpu.dimension_semantics<parallel>], iteration_bounds = array<i64: 2>, scalar_prefetch = 0 : i64, scratch_operands = 0 : i64, tpu.core_type = #tpu.core_type<tc>, window_params = [{transform_indices = @transform_0, window_bounds = array<i64: 1, 4, 256>}, {pipeline_mode = #tpu.pipeline_mode<synchronous>, transform_indices = @transform_1, window_bounds = array<i64: 9, 256>}, {pipeline_mode = #tpu.pipeline_mode<synchronous>, transform_indices = @transform_2, window_bounds = array<i64: 4, 1>}, {pipeline_mode = #tpu.pipeline_mode<synchronous>, transform_indices = @transform_3, window_bounds = array<i64: 4, 1>}, {pipeline_mode = #tpu.pipeline_mode<synchronous>, transform_indices = @transform_4, window_bounds = array<i64: 4, 4>}, {pipeline_mode = #tpu.pipeline_mode<synchronous>, transform_indices = @transform_5, window_bounds = array<i64: 4, 1>}, {pipeline_mode = #tpu.pipeline_mode<synchronous>, transform_indices = @transform_6, window_bounds = array<i64: 4, 1>}, {pipeline_mode = #tpu.pipeline_mode<synchronous>, transform_indices = @transform_7, window_bounds = array<i64: 4, 36>}, {pipeline_mode = #tpu.pipeline_mode<synchronous>, transform_indices = @transform_8, window_bounds = array<i64: 8, 1>}, {pipeline_mode = #tpu.pipeline_mode<synchronous>, transform_indices = @transform_9, window_bounds = array<i64: 8, 1>}, {pipeline_mode = #tpu.pipeline_mode<synchronous>, transform_indices = @transform_10, window_bounds = array<i64: 16, 8>}, {transform_indices = @transform_11, window_bounds = array<i64: 1, 16, 256>}]} {
    %c0 = arith.constant 0 : index
    %c0_0 = arith.constant 0 : index
    %c0_1 = arith.constant 0 : index
    %0 = vector.load %arg1[%c0, %c0_0, %c0_1] : memref<1x4x256xf32, #tpu.memory_space<vmem>>, vector<1x4x256xf32>
    %1 = vector.shape_cast %0 : vector<1x4x256xf32> to vector<4x256xf32>
    %c0_2 = arith.constant 0 : index
    %c0_3 = arith.constant 0 : index
    %2 = vector.load %arg3[%c0_2, %c0_3] : memref<4x1xf32, #tpu.memory_space<vmem>>, vector<4x1xf32>
    %3 = vector.broadcast %2 : vector<4x1xf32> to vector<4x256xf32>
    %4 = arith.mulf %1, %3 : vector<4x256xf32>
    %c0_4 = arith.constant 0 : index
    %c0_5 = arith.constant 0 : index
    %5 = vector.load %arg4[%c0_4, %c0_5] : memref<4x1xf32, #tpu.memory_space<vmem>>, vector<4x1xf32>
    %6 = vector.broadcast %5 : vector<4x1xf32> to vector<4x256xf32>
    %7 = arith.addf %4, %6 : vector<4x256xf32>
    %cst = arith.constant 0.000000e+00 : f32
    %8 = vector.broadcast %cst : f32 to vector<4x256xf32>
    %9 = arith.maximumf %7, %8 : vector<4x256xf32>
    %c0_6 = arith.constant 0 : index
    %c0_7 = arith.constant 0 : index
    %10 = vector.load %arg5[%c0_6, %c0_7] : memref<4x4xbf16, #tpu.memory_space<vmem>>, vector<4x4xbf16>
    %11 = arith.truncf %9 : vector<4x256xf32> to vector<4x256xbf16>
    %cst_8 = arith.constant dense<0.000000e+00> : vector<4x256xf32>
    %12 = tpu.matmul %10, %11, %cst_8 {dimension_numbers = #tpu.dot_dimension_numbers<[1], [0], [0], [1], [0, 0, 1, 1], [], []>} : vector<4x4xbf16>, vector<4x256xbf16>, vector<4x256xf32> -> vector<4x256xf32>
    %c0_9 = arith.constant 0 : index
    %c0_10 = arith.constant 0 : index
    %13 = vector.load %arg6[%c0_9, %c0_10] : memref<4x1xf32, #tpu.memory_space<vmem>>, vector<4x1xf32>
    %14 = vector.broadcast %13 : vector<4x1xf32> to vector<4x256xf32>
    %15 = arith.mulf %12, %14 : vector<4x256xf32>
    %c0_11 = arith.constant 0 : index
    %c0_12 = arith.constant 0 : index
    %16 = vector.load %arg7[%c0_11, %c0_12] : memref<4x1xf32, #tpu.memory_space<vmem>>, vector<4x1xf32>
    %17 = vector.broadcast %16 : vector<4x1xf32> to vector<4x256xf32>
    %18 = arith.addf %15, %17 : vector<4x256xf32>
    %cst_13 = arith.constant 0.000000e+00 : f32
    %19 = vector.broadcast %cst_13 : f32 to vector<4x256xf32>
    %20 = arith.maximumf %18, %19 : vector<4x256xf32>
    %c0_14 = arith.constant 0 : index
    %c0_15 = arith.constant 0 : index
    %21 = vector.load %arg2[%c0_14, %c0_15] : memref<9x256xf32, #tpu.memory_space<vmem>>, vector<9x256xf32>
    %22 = vector.extract_strided_slice %20 {offsets = [0, 239], sizes = [4, 17], strides = [1, 1]} : vector<4x256xf32> to vector<4x17xf32>
    %23 = vector.extract_strided_slice %20 {offsets = [0, 0], sizes = [4, 239], strides = [1, 1]} : vector<4x256xf32> to vector<4x239xf32>
    %24 = tpu.concatenate %22, %23 in 1 : vector<4x17xf32>, vector<4x239xf32> -> vector<4x256xf32>
    %25 = vector.extract_strided_slice %21 {offsets = [0, 0], sizes = [1, 256], strides = [1, 1]} : vector<9x256xf32> to vector<1x256xf32>
    %26 = vector.broadcast %25 : vector<1x256xf32> to vector<4x256xf32>
    %27 = arith.mulf %24, %26 : vector<4x256xf32>
    %28 = vector.extract_strided_slice %20 {offsets = [0, 240], sizes = [4, 16], strides = [1, 1]} : vector<4x256xf32> to vector<4x16xf32>
    %29 = vector.extract_strided_slice %20 {offsets = [0, 0], sizes = [4, 240], strides = [1, 1]} : vector<4x256xf32> to vector<4x240xf32>
    %30 = tpu.concatenate %28, %29 in 1 : vector<4x16xf32>, vector<4x240xf32> -> vector<4x256xf32>
    %31 = vector.extract_strided_slice %21 {offsets = [1, 0], sizes = [1, 256], strides = [1, 1]} : vector<9x256xf32> to vector<1x256xf32>
    %32 = vector.broadcast %31 : vector<1x256xf32> to vector<4x256xf32>
    %33 = arith.mulf %30, %32 : vector<4x256xf32>
    %34 = vector.extract_strided_slice %20 {offsets = [0, 241], sizes = [4, 15], strides = [1, 1]} : vector<4x256xf32> to vector<4x15xf32>
    %35 = vector.extract_strided_slice %20 {offsets = [0, 0], sizes = [4, 241], strides = [1, 1]} : vector<4x256xf32> to vector<4x241xf32>
    %36 = tpu.concatenate %34, %35 in 1 : vector<4x15xf32>, vector<4x241xf32> -> vector<4x256xf32>
    %37 = vector.extract_strided_slice %21 {offsets = [2, 0], sizes = [1, 256], strides = [1, 1]} : vector<9x256xf32> to vector<1x256xf32>
    %38 = vector.broadcast %37 : vector<1x256xf32> to vector<4x256xf32>
    %39 = arith.mulf %36, %38 : vector<4x256xf32>
    %40 = vector.extract_strided_slice %20 {offsets = [0, 255], sizes = [4, 1], strides = [1, 1]} : vector<4x256xf32> to vector<4x1xf32>
    %41 = vector.extract_strided_slice %20 {offsets = [0, 0], sizes = [4, 255], strides = [1, 1]} : vector<4x256xf32> to vector<4x255xf32>
    %42 = tpu.concatenate %40, %41 in 1 : vector<4x1xf32>, vector<4x255xf32> -> vector<4x256xf32>
    %43 = vector.extract_strided_slice %21 {offsets = [3, 0], sizes = [1, 256], strides = [1, 1]} : vector<9x256xf32> to vector<1x256xf32>
    %44 = vector.broadcast %43 : vector<1x256xf32> to vector<4x256xf32>
    %45 = arith.mulf %42, %44 : vector<4x256xf32>
    %46 = vector.extract_strided_slice %20 {offsets = [0, 1], sizes = [4, 255], strides = [1, 1]} : vector<4x256xf32> to vector<4x255xf32>
    %47 = vector.extract_strided_slice %20 {offsets = [0, 0], sizes = [4, 1], strides = [1, 1]} : vector<4x256xf32> to vector<4x1xf32>
    %48 = tpu.concatenate %46, %47 in 1 : vector<4x255xf32>, vector<4x1xf32> -> vector<4x256xf32>
    %49 = vector.extract_strided_slice %21 {offsets = [5, 0], sizes = [1, 256], strides = [1, 1]} : vector<9x256xf32> to vector<1x256xf32>
    %50 = vector.broadcast %49 : vector<1x256xf32> to vector<4x256xf32>
    %51 = arith.mulf %48, %50 : vector<4x256xf32>
    %52 = vector.extract_strided_slice %20 {offsets = [0, 15], sizes = [4, 241], strides = [1, 1]} : vector<4x256xf32> to vector<4x241xf32>
    %53 = vector.extract_strided_slice %20 {offsets = [0, 0], sizes = [4, 15], strides = [1, 1]} : vector<4x256xf32> to vector<4x15xf32>
    %54 = tpu.concatenate %52, %53 in 1 : vector<4x241xf32>, vector<4x15xf32> -> vector<4x256xf32>
    %55 = vector.extract_strided_slice %21 {offsets = [6, 0], sizes = [1, 256], strides = [1, 1]} : vector<9x256xf32> to vector<1x256xf32>
    %56 = vector.broadcast %55 : vector<1x256xf32> to vector<4x256xf32>
    %57 = arith.mulf %54, %56 : vector<4x256xf32>
    %58 = vector.extract_strided_slice %20 {offsets = [0, 16], sizes = [4, 240], strides = [1, 1]} : vector<4x256xf32> to vector<4x240xf32>
    %59 = vector.extract_strided_slice %20 {offsets = [0, 0], sizes = [4, 16], strides = [1, 1]} : vector<4x256xf32> to vector<4x16xf32>
    %60 = tpu.concatenate %58, %59 in 1 : vector<4x240xf32>, vector<4x16xf32> -> vector<4x256xf32>
    %61 = vector.extract_strided_slice %21 {offsets = [7, 0], sizes = [1, 256], strides = [1, 1]} : vector<9x256xf32> to vector<1x256xf32>
    %62 = vector.broadcast %61 : vector<1x256xf32> to vector<4x256xf32>
    %63 = arith.mulf %60, %62 : vector<4x256xf32>
    %64 = vector.extract_strided_slice %20 {offsets = [0, 17], sizes = [4, 239], strides = [1, 1]} : vector<4x256xf32> to vector<4x239xf32>
    %65 = vector.extract_strided_slice %20 {offsets = [0, 0], sizes = [4, 17], strides = [1, 1]} : vector<4x256xf32> to vector<4x17xf32>
    %66 = tpu.concatenate %64, %65 in 1 : vector<4x239xf32>, vector<4x17xf32> -> vector<4x256xf32>
    %67 = vector.extract_strided_slice %21 {offsets = [8, 0], sizes = [1, 256], strides = [1, 1]} : vector<9x256xf32> to vector<1x256xf32>
    %68 = vector.broadcast %67 : vector<1x256xf32> to vector<4x256xf32>
    %69 = arith.mulf %66, %68 : vector<4x256xf32>
    %70 = tpu.concatenate %27, %33, %39, %45, %20, %51, %57, %63, %69 in 0 : vector<4x256xf32>, vector<4x256xf32>, vector<4x256xf32>, vector<4x256xf32>, vector<4x256xf32>, vector<4x256xf32>, vector<4x256xf32>, vector<4x256xf32>, vector<4x256xf32> -> vector<36x256xf32>
    %c0_16 = arith.constant 0 : index
    %c0_17 = arith.constant 0 : index
    %71 = vector.load %arg8[%c0_16, %c0_17] : memref<4x36xbf16, #tpu.memory_space<vmem>>, vector<4x36xbf16>
    %72 = arith.truncf %70 : vector<36x256xf32> to vector<36x256xbf16>
    %cst_18 = arith.constant dense<0.000000e+00> : vector<4x256xf32>
    %73 = tpu.matmul %71, %72, %cst_18 {dimension_numbers = #tpu.dot_dimension_numbers<[1], [0], [0], [1], [0, 0, 1, 1], [], []>} : vector<4x36xbf16>, vector<36x256xbf16>, vector<4x256xf32> -> vector<4x256xf32>
    %74 = tpu.concatenate %73, %1 in 0 : vector<4x256xf32>, vector<4x256xf32> -> vector<8x256xf32>
    %c0_19 = arith.constant 0 : index
    %c0_20 = arith.constant 0 : index
    %75 = vector.load %arg9[%c0_19, %c0_20] : memref<8x1xf32, #tpu.memory_space<vmem>>, vector<8x1xf32>
    %76 = vector.broadcast %75 : vector<8x1xf32> to vector<8x256xf32>
    %77 = arith.mulf %74, %76 : vector<8x256xf32>
    %c0_21 = arith.constant 0 : index
    %c0_22 = arith.constant 0 : index
    %78 = vector.load %arg10[%c0_21, %c0_22] : memref<8x1xf32, #tpu.memory_space<vmem>>, vector<8x1xf32>
    %79 = vector.broadcast %78 : vector<8x1xf32> to vector<8x256xf32>
    %80 = arith.addf %77, %79 : vector<8x256xf32>
    %cst_23 = arith.constant 0.000000e+00 : f32
    %81 = vector.broadcast %cst_23 : f32 to vector<8x256xf32>
    %82 = arith.maximumf %80, %81 : vector<8x256xf32>
    %c0_24 = arith.constant 0 : index
    %c0_25 = arith.constant 0 : index
    %83 = vector.load %arg11[%c0_24, %c0_25] : memref<16x8xbf16, #tpu.memory_space<vmem>>, vector<16x8xbf16>
    %84 = arith.truncf %82 : vector<8x256xf32> to vector<8x256xbf16>
    %cst_26 = arith.constant dense<0.000000e+00> : vector<16x256xf32>
    %85 = tpu.matmul %83, %84, %cst_26 {dimension_numbers = #tpu.dot_dimension_numbers<[1], [0], [0], [1], [0, 0, 1, 1], [], []>} : vector<16x8xbf16>, vector<8x256xbf16>, vector<16x256xf32> -> vector<16x256xf32>
    %c0_27 = arith.constant 0 : index
    %c0_28 = arith.constant 0 : index
    %c0_29 = arith.constant 0 : index
    %86 = vector.load %arg12[%c0_27, %c0_28, %c0_29] : memref<1x16x256xf32, #tpu.memory_space<vmem>>, vector<1x16x256xf32>
    %87 = vector.shape_cast %86 : vector<1x16x256xf32> to vector<16x256xf32>
    %88 = vector.shape_cast %85 : vector<16x256xf32> to vector<1x16x256xf32>
    tpu.vector_store %arg12[%c0_27, %c0_28, %c0_29], %88 {strides = array<i32>} : memref<1x16x256xf32, #tpu.memory_space<vmem>>, vector<1x16x256xf32>,
    return
  }
  func.func @transform_0(%arg0: i32) -> (i32, i32, i32) {
    %c0_i32 = arith.constant 0 : i32
    %c0_i32_0 = arith.constant 0 : i32
    %c0_i32_1 = arith.constant 0 : i32
    return %arg0, %c0_i32, %c0_i32_0 : i32, i32, i32
  }
  func.func @transform_1(%arg0: i32) -> (i32, i32) {
    %c0_i32 = arith.constant 0 : i32
    %c0_i32_0 = arith.constant 0 : i32
    %c0_i32_1 = arith.constant 0 : i32
    return %c0_i32, %c0_i32_0 : i32, i32
  }
  func.func @transform_2(%arg0: i32) -> (i32, i32) {
    %c0_i32 = arith.constant 0 : i32
    %c0_i32_0 = arith.constant 0 : i32
    %c0_i32_1 = arith.constant 0 : i32
    return %c0_i32, %c0_i32_0 : i32, i32
  }
  func.func @transform_3(%arg0: i32) -> (i32, i32) {
    %c0_i32 = arith.constant 0 : i32
    %c0_i32_0 = arith.constant 0 : i32
    %c0_i32_1 = arith.constant 0 : i32
    return %c0_i32, %c0_i32_0 : i32, i32
  }
  func.func @transform_4(%arg0: i32) -> (i32, i32) {
    %c0_i32 = arith.constant 0 : i32
    %c0_i32_0 = arith.constant 0 : i32
    %c0_i32_1 = arith.constant 0 : i32
    return %c0_i32, %c0_i32_0 : i32, i32
  }
  func.func @transform_5(%arg0: i32) -> (i32, i32) {
    %c0_i32 = arith.constant 0 : i32
    %c0_i32_0 = arith.constant 0 : i32
    %c0_i32_1 = arith.constant 0 : i32
    return %c0_i32, %c0_i32_0 : i32, i32
  }
  func.func @transform_6(%arg0: i32) -> (i32, i32) {
    %c0_i32 = arith.constant 0 : i32
    %c0_i32_0 = arith.constant 0 : i32
    %c0_i32_1 = arith.constant 0 : i32
    return %c0_i32, %c0_i32_0 : i32, i32
  }
  func.func @transform_7(%arg0: i32) -> (i32, i32) {
    %c0_i32 = arith.constant 0 : i32
    %c0_i32_0 = arith.constant 0 : i32
    %c0_i32_1 = arith.constant 0 : i32
    return %c0_i32, %c0_i32_0 : i32, i32
  }
  func.func @transform_8(%arg0: i32) -> (i32, i32) {
    %c0_i32 = arith.constant 0 : i32
    %c0_i32_0 = arith.constant 0 : i32
    %c0_i32_1 = arith.constant 0 : i32
    return %c0_i32, %c0_i32_0 : i32, i32
  }
  func.func @transform_9(%arg0: i32) -> (i32, i32) {
    %c0_i32 = arith.constant 0 : i32
    %c0_i32_0 = arith.constant 0 : i32
    %c0_i32_1 = arith.constant 0 : i32
    return %c0_i32, %c0_i32_0 : i32, i32
  }
  func.func @transform_10(%arg0: i32) -> (i32, i32) {
    %c0_i32 = arith.constant 0 : i32
    %c0_i32_0 = arith.constant 0 : i32
    %c0_i32_1 = arith.constant 0 : i32
    return %c0_i32, %c0_i32_0 : i32, i32
  }
  func.func @transform_11(%arg0: i32) -> (i32, i32, i32) {
    %c0_i32 = arith.constant 0 : i32
    %c0_i32_0 = arith.constant 0 : i32
    %c0_i32_1 = arith.constant 0 : i32
    return %arg0, %c0_i32, %c0_i32_0 : i32, i32, i32
  }
}

</mosaic_0001>

<llo_original>
// kernel: tpu_custom_call.1
$region0: #{tpu_custom_call.1}
  #allocation0 [shape = 'u32[]', space=smem, size = 0x4, offset = 0x4, fixed_abs, tag = 'smem constant byte address 0x4 - core index']
  #allocation1 [shape = 'u32[144,128]{1,0:T(1,128)}', space=vmem, size = 0x12000, scoped, tag = 'internal scratch']
  %s0 = inlined_call_operand.vmem [shape: f32[2,4,256], index: 0, kind: input, shape index: {}]
  %s1 = inlined_call_operand.vmem [shape: f32[9,256], index: 1, kind: input, shape index: {}]
  %s2 = inlined_call_operand.vmem [shape: f32[4,1], index: 2, kind: input, shape index: {}]
  %s3 = inlined_call_operand.vmem [shape: f32[4,1], index: 3, kind: input, shape index: {}]
  %s4 = inlined_call_operand.vmem [shape: bf16[4,4], index: 4, kind: input, shape index: {}]
  %s5 = inlined_call_operand.vmem [shape: f32[4,1], index: 5, kind: input, shape index: {}]
  %s6 = inlined_call_operand.vmem [shape: f32[4,1], index: 6, kind: input, shape index: {}]
  %s7 = inlined_call_operand.vmem [shape: bf16[4,36], index: 7, kind: input, shape index: {}]
  %s8 = inlined_call_operand.vmem [shape: f32[8,1], index: 8, kind: input, shape index: {}]
  %s9 = inlined_call_operand.vmem [shape: f32[8,1], index: 9, kind: input, shape index: {}]
  %s10 = inlined_call_operand.vmem [shape: bf16[16,8], index: 10, kind: input, shape index: {}]
  %s11 = inlined_call_operand.hbm [shape: f32[2,16,256], index: 11, kind: output, shape index: {}]
  %s12 = sld [smem:[#allocation0]]
  $region77: #{tpu_custom_call.1} parent=0
    _
  %s14 = ssub.s32 1, %s12
  %s15 = scalar_select 0, %s14, %s12
  $region1: #{tpu_custom_call.1} parent=0
    #allocation2 [shape = 'u8[32768]{0}', space=vmem, size = 0x8000, scoped, tag = 'output window, operand 0']
    #allocation3 [shape = 's32[2]{0}', space=sflag, size = 0x8, scoped, tag = 'scoped memory for tpu_custom_call.1']
    %16 = vsyncpa [#allocation3], 0
    %s17 = scalar_lea.sflag [#allocation3], 1
    %18 = vsyncpa %s17, 0
    loop: start=0, step=1, limit=4
    $region2: #{tpu_custom_call.1} parent=1 // loop_pre_header
      _
    $region3: #{tpu_custom_call.1} parent=1 // loop_header
      %s20 = sphi 0, %s24
      %p21 = scmp.ge.s32.totalorder %s20, 4
      %s30 = sphi 0, %s32
      %s33 = sphi 0, %s30
      %s34 = sphi 0, %s33
      %s50 = sphi 0, %s34
      %s54 = sphi 0, %s54
      %s56 = sphi 0, %s54
      %s57 = sphi 0, %s56
      %s71 = sphi 0, %s57
      %s75 = sphi 0, %s75
      %s77 = sphi 0, %s75
      %s78 = sphi 0, %s77
      %s92 = sphi 0, %s78
      %s96 = sphi 0, %s96
      %s98 = sphi 0, %s96
      %s99 = sphi 0, %s98
      %s113 = sphi 0, %s99
      %s117 = sphi 0, %s117
      %s119 = sphi 0, %s117
      %s120 = sphi 0, %s119
      %s134 = sphi 0, %s120
      %s138 = sphi 0, %s138
      %s140 = sphi 0, %s138
      %s141 = sphi 0, %s140
      %s155 = sphi 0, %s141
      %s159 = sphi 0, %s159
      %s161 = sphi 0, %s159
      %s162 = sphi 0, %s161
      %s176 = sphi 0, %s162
      %s180 = sphi 0, %s180
      %s182 = sphi 0, %s180
      %s183 = sphi 0, %s182
      %s197 = sphi 0, %s183
      %s201 = sphi 0, %s201
      %s203 = sphi 0, %s201
      %s204 = sphi 0, %s203
      %s218 = sphi 0, %s204
      %s222 = sphi 0, %s222
      %s224 = sphi 0, %s222
      %s225 = sphi 0, %s224
      %s239 = sphi 0, %s225
      %s243 = sphi 0, %s243
      %s245 = sphi 0, %s243
      %s246 = sphi 0, %s245
      %s260 = sphi 0, %s246
      %s266 = sphi 0, %s268
      %s269 = sphi 0, %s266
      %s270 = sphi 0, %s269
      %s286 = sphi 0, %s270
    $region4: #{tpu_custom_call.1} parent=1 // loop_header_branch
      %23 = sbr.rel (%p21) target = $region8
    $region5: #{tpu_custom_call.1} parent=1 // loop_body
      %s25 = ssub.s32 %s20, 1
      %s26 = ssub.s32 %s20, 2
      %s27 = sadd.s32 %s20, 1
      %s28 = ssub.s32 %s20, %s27
      %p29 = scmp.eq.s32.totalorder %s28, 0
      %s31 = sadd.s32 %s30, 1
      %s32 = scalar_select %p29, %s30, %s31
      %p35 = pneg %p29
      %p36 = scmp.eq.s32.totalorder %s20, 1
      %p37 = por %p35, %p36
      %p38 = scmp.ne.s32.totalorder %s30, %s33
      %p39 = scmp.eq.s32.totalorder %s20, 0
      %p40 = por %p38, %p39
      %p41 = scmp.ne.s32.totalorder %s30, %s33
      %p42 = scmp.eq.s32.totalorder %s25, 1
      %p43 = por %p41, %p42
      %p44 = scmp.ne.s32.totalorder %s33, %s34
      %p45 = scmp.eq.s32.totalorder %s25, 0
      %p46 = por %p44, %p45
      %p47 = scmp.ne.s32.totalorder %s33, %s34
      %p48 = scmp.eq.s32.totalorder %s26, 1
      %p49 = por %p47, %p48
      %p51 = scmp.ne.s32.totalorder %s34, %s50
      %p52 = scmp.eq.s32.totalorder %s26, 0
      %p53 = por %p51, %p52
      %s55 = sadd.s32 %s54, 1
      %p58 = scmp.eq.s32.totalorder %s20, 1
      %p59 = scmp.ne.s32.totalorder %s54, %s56
      %p60 = scmp.eq.s32.totalorder %s20, 0
      %p61 = por %p59, %p60
      %p62 = scmp.ne.s32.totalorder %s54, %s56
      %p63 = scmp.eq.s32.totalorder %s25, 1
      %p64 = por %p62, %p63
      %p65 = scmp.ne.s32.totalorder %s56, %s57
      %p66 = scmp.eq.s32.totalorder %s25, 0
      %p67 = por %p65, %p66
      %p68 = scmp.ne.s32.totalorder %s56, %s57
      %p69 = scmp.eq.s32.totalorder %s26, 1
      %p70 = por %p68, %p69
      %p72 = scmp.ne.s32.totalorder %s57, %s71
      %p73 = scmp.eq.s32.totalorder %s26, 0
      %p74 = por %p72, %p73
      %s76 = sadd.s32 %s75, 1
      %p79 = scmp.eq.s32.totalorder %s20, 1
      %p80 = scmp.ne.s32.totalorder %s75, %s77
      %p81 = scmp.eq.s32.totalorder %s20, 0
      %p82 = por %p80, %p81
      %p83 = scmp.ne.s32.totalorder %s75, %s77
      %p84 = scmp.eq.s32.totalorder %s25, 1
      %p85 = por %p83, %p84
      %p86 = scmp.ne.s32.totalorder %s77, %s78
      %p87 = scmp.eq.s32.totalorder %s25, 0
      %p88 = por %p86, %p87
      %p89 = scmp.ne.s32.totalorder %s77, %s78
      %p90 = scmp.eq.s32.totalorder %s26, 1
      %p91 = por %p89, %p90
      %p93 = scmp.ne.s32.totalorder %s78, %s92
      %p94 = scmp.eq.s32.totalorder %s26, 0
      %p95 = por %p93, %p94
      %s97 = sadd.s32 %s96, 1
      %p100 = scmp.eq.s32.totalorder %s20, 1
      %p101 = scmp.ne.s32.totalorder %s96, %s98
      %p102 = scmp.eq.s32.totalorder %s20, 0
      %p103 = por %p101, %p102
      %p104 = scmp.ne.s32.totalorder %s96, %s98
      %p105 = scmp.eq.s32.totalorder %s25, 1
      %p106 = por %p104, %p105
      %p107 = scmp.ne.s32.totalorder %s98, %s99
      %p108 = scmp.eq.s32.totalorder %s25, 0
      %p109 = por %p107, %p108
      %p110 = scmp.ne.s32.totalorder %s98, %s99
      %p111 = scmp.eq.s32.totalorder %s26, 1
      %p112 = por %p110, %p111
      %p114 = scmp.ne.s32.totalorder %s99, %s113
      %p115 = scmp.eq.s32.totalorder %s26, 0
      %p116 = por %p114, %p115
      %s118 = sadd.s32 %s117, 1
      %p121 = scmp.eq.s32.totalorder %s20, 1
      %p122 = scmp.ne.s32.totalorder %s117, %s119
      %p123 = scmp.eq.s32.totalorder %s20, 0
      %p124 = por %p122, %p123
      %p125 = scmp.ne.s32.totalorder %s117, %s119
      %p126 = scmp.eq.s32.totalorder %s25, 1
      %p127 = por %p125, %p126
      %p128 = scmp.ne.s32.totalorder %s119, %s120
      %p129 = scmp.eq.s32.totalorder %s25, 0
      %p130 = por %p128, %p129
      %p131 = scmp.ne.s32.totalorder %s119, %s120
      %p132 = scmp.eq.s32.totalorder %s26, 1
      %p133 = por %p131, %p132
      %p135 = scmp.ne.s32.totalorder %s120, %s134
      %p136 = scmp.eq.s32.totalorder %s26, 0
      %p137 = por %p135, %p136
      %s139 = sadd.s32 %s138, 1
      %p142 = scmp.eq.s32.totalorder %s20, 1
      %p143 = scmp.ne.s32.totalorder %s138, %s140
      %p144 = scmp.eq.s32.totalorder %s20, 0
      %p145 = por %p143, %p144
      %p146 = scmp.ne.s32.totalorder %s138, %s140
      %p147 = scmp.eq.s32.totalorder %s25, 1
      %p148 = por %p146, %p147
      %p149 = scmp.ne.s32.totalorder %s140, %s141
      %p150 = scmp.eq.s32.totalorder %s25, 0
      %p151 = por %p149, %p150
      %p152 = scmp.ne.s32.totalorder %s140, %s141
      %p153 = scmp.eq.s32.totalorder %s26, 1
      %p154 = por %p152, %p153
      %p156 = scmp.ne.s32.totalorder %s141, %s155
      %p157 = scmp.eq.s32.totalorder %s26, 0
      %p158 = por %p156, %p157
      %s160 = sadd.s32 %s159, 1
      %p163 = scmp.eq.s32.totalorder %s20, 1
      %p164 = scmp.ne.s32.totalorder %s159, %s161
      %p165 = scmp.eq.s32.totalorder %s20, 0
      %p166 = por %p164, %p165
      %p167 = scmp.ne.s32.totalorder %s159, %s161
      %p168 = scmp.eq.s32.totalorder %s25, 1
      %p169 = por %p167, %p168
      %p170 = scmp.ne.s32.totalorder %s161, %s162
      %p171 = scmp.eq.s32.totalorder %s25, 0
      %p172 = por %p170, %p171
      %p173 = scmp.ne.s32.totalorder %s161, %s162
      %p174 = scmp.eq.s32.totalorder %s26, 1
      %p175 = por %p173, %p174
      %p177 = scmp.ne.s32.totalorder %s162, %s176
      %p178 = scmp.eq.s32.totalorder %s26, 0
      %p179 = por %p177, %p178
      %s181 = sadd.s32 %s180, 1
      %p184 = scmp.eq.s32.totalorder %s20, 1
      %p185 = scmp.ne.s32.totalorder %s180, %s182
      %p186 = scmp.eq.s32.totalorder %s20, 0
      %p187 = por %p185, %p186
      %p188 = scmp.ne.s32.totalorder %s180, %s182
      %p189 = scmp.eq.s32.totalorder %s25, 1
      %p190 = por %p188, %p189
      %p191 = scmp.ne.s32.totalorder %s182, %s183
      %p192 = scmp.eq.s32.totalorder %s25, 0
      %p193 = por %p191, %p192
      %p194 = scmp.ne.s32.totalorder %s182, %s183
      %p195 = scmp.eq.s32.totalorder %s26, 1
      %p196 = por %p194, %p195
      %p198 = scmp.ne.s32.totalorder %s183, %s197
      %p199 = scmp.eq.s32.totalorder %s26, 0
      %p200 = por %p198, %p199
      %s202 = sadd.s32 %s201, 1
      %p205 = scmp.eq.s32.totalorder %s20, 1
      %p206 = scmp.ne.s32.totalorder %s201, %s203
      %p207 = scmp.eq.s32.totalorder %s20, 0
      %p208 = por %p206, %p207
      %p209 = scmp.ne.s32.totalorder %s201, %s203
      %p210 = scmp.eq.s32.totalorder %s25, 1
      %p211 = por %p209, %p210
      %p212 = scmp.ne.s32.totalorder %s203, %s204
      %p213 = scmp.eq.s32.totalorder %s25, 0
      %p214 = por %p212, %p213
      %p215 = scmp.ne.s32.totalorder %s203, %s204
      %p216 = scmp.eq.s32.totalorder %s26, 1
      %p217 = por %p215, %p216
      %p219 = scmp.ne.s32.totalorder %s204, %s218
      %p220 = scmp.eq.s32.totalorder %s26, 0
      %p221 = por %p219, %p220
      %s223 = sadd.s32 %s222, 1
      %p226 = scmp.eq.s32.totalorder %s20, 1
      %p227 = scmp.ne.s32.totalorder %s222, %s224
      %p228 = scmp.eq.s32.totalorder %s20, 0
      %p229 = por %p227, %p228
      %p230 = scmp.ne.s32.totalorder %s222, %s224
      %p231 = scmp.eq.s32.totalorder %s25, 1
      %p232 = por %p230, %p231
      %p233 = scmp.ne.s32.totalorder %s224, %s225
      %p234 = scmp.eq.s32.totalorder %s25, 0
      %p235 = por %p233, %p234
      %p236 = scmp.ne.s32.totalorder %s224, %s225
      %p237 = scmp.eq.s32.totalorder %s26, 1
      %p238 = por %p236, %p237
      %p240 = scmp.ne.s32.totalorder %s225, %s239
      %p241 = scmp.eq.s32.totalorder %s26, 0
      %p242 = por %p240, %p241
      %s244 = sadd.s32 %s243, 1
      %p247 = scmp.eq.s32.totalorder %s20, 1
      %p248 = scmp.ne.s32.totalorder %s243, %s245
      %p249 = scmp.eq.s32.totalorder %s20, 0
      %p250 = por %p248, %p249
      %p251 = scmp.ne.s32.totalorder %s243, %s245
      %p252 = scmp.eq.s32.totalorder %s25, 1
      %p253 = por %p251, %p252
      %p254 = scmp.ne.s32.totalorder %s245, %s246
      %p255 = scmp.eq.s32.totalorder %s25, 0
      %p256 = por %p254, %p255
      %p257 = scmp.ne.s32.totalorder %s245, %s246
      %p258 = scmp.eq.s32.totalorder %s26, 1
      %p259 = por %p257, %p258
      %p261 = scmp.ne.s32.totalorder %s246, %s260
      %p262 = scmp.eq.s32.totalorder %s26, 0
      %p263 = por %p261, %p262
      %s264 = ssub.s32 %s20, %s27
      %p265 = scmp.eq.s32.totalorder %s264, 0
      %s267 = sadd.s32 %s266, 1
      %s268 = scalar_select %p265, %s266, %s267
      %p271 = pneg %p265
      %p272 = scmp.eq.s32.totalorder %s20, 1
      %p273 = por %p271, %p272
      %p274 = scmp.ne.s32.totalorder %s266, %s269
      %p275 = scmp.eq.s32.totalorder %s20, 0
      %p276 = por %p274, %p275
      %p277 = scmp.ne.s32.totalorder %s266, %s269
      %p278 = scmp.eq.s32.totalorder %s25, 1
      %p279 = por %p277, %p278
      %p280 = scmp.ne.s32.totalorder %s269, %s270
      %p281 = scmp.eq.s32.totalorder %s25, 0
      %p282 = por %p280, %p281
      %p283 = scmp.ne.s32.totalorder %s269, %s270
      %p284 = scmp.eq.s32.totalorder %s26, 1
      %p285 = por %p283, %p284
      %p287 = scmp.ne.s32.totalorder %s270, %s286
      %p288 = scmp.eq.s32.totalorder %s26, 0
      %p289 = por %p287, %p288
      %p290 = scmp.le.s32.totalorder 1, %s20
      %p291 = scmp.lt.s32.totalorder %s20, 3
      %p292 = pnand %p290, %p291
      %p293 = pneg %p292
      // Predicated region
      $region9: #{tpu_custom_call.1} parent=5 // pred_check
        _
      $region10: #{tpu_custom_call.1} parent=5 // pred_check_branch
        %295 = sbr.rel (%p292) target = $region12
      $region11: #{tpu_custom_call.1} parent=5 // pred_region
        %s296 = ssub.s32 %s20, 1
        // Predicated region
        $region13: #{tpu_custom_call.1} parent=11 // pred_check
          %p297 = pneg %p67
        $region14: #{tpu_custom_call.1} parent=11 // pred_check_branch
          %299 = sbr.rel (%p297) target = $region16
        $region15: #{tpu_custom_call.1} parent=11 // pred_region
          _
        $region16: #{tpu_custom_call.1} parent=11 // pred_fallthru
          _
        // Predicated region
        $region17: #{tpu_custom_call.1} parent=11 // pred_check
          %p300 = pneg %p88
        $region18: #{tpu_custom_call.1} parent=11 // pred_check_branch
          %302 = sbr.rel (%p300) target = $region20
        $region19: #{tpu_custom_call.1} parent=11 // pred_region
          _
        $region20: #{tpu_custom_call.1} parent=11 // pred_fallthru
          _
        // Predicated region
        $region21: #{tpu_custom_call.1} parent=11 // pred_check
          %p303 = pneg %p109
        $region22: #{tpu_custom_call.1} parent=11 // pred_check_branch
          %305 = sbr.rel (%p303) target = $region24
        $region23: #{tpu_custom_call.1} parent=11 // pred_region
          _
        $region24: #{tpu_custom_call.1} parent=11 // pred_fallthru
          _
        // Predicated region
        $region25: #{tpu_custom_call.1} parent=11 // pred_check
          %p306 = pneg %p130
        $region26: #{tpu_custom_call.1} parent=11 // pred_check_branch
          %308 = sbr.rel (%p306) target = $region28
        $region27: #{tpu_custom_call.1} parent=11 // pred_region
          _
        $region28: #{tpu_custom_call.1} parent=11 // pred_fallthru
          _
        // Predicated region
        $region29: #{tpu_custom_call.1} parent=11 // pred_check
          %p309 = pneg %p151
        $region30: #{tpu_custom_call.1} parent=11 // pred_check_branch
          %311 = sbr.rel (%p309) target = $region32
        $region31: #{tpu_custom_call.1} parent=11 // pred_region
          _
        $region32: #{tpu_custom_call.1} parent=11 // pred_fallthru
          _
        // Predicated region
        $region33: #{tpu_custom_call.1} parent=11 // pred_check
          %p312 = pneg %p172
        $region34: #{tpu_custom_call.1} parent=11 // pred_check_branch
          %314 = sbr.rel (%p312) target = $region36
        $region35: #{tpu_custom_call.1} parent=11 // pred_region
          _
        $region36: #{tpu_custom_call.1} parent=11 // pred_fallthru
          _
        // Predicated region
        $region37: #{tpu_custom_call.1} parent=11 // pred_check
          %p315 = pneg %p193
        $region38: #{tpu_custom_call.1} parent=11 // pred_check_branch
          %317 = sbr.rel (%p315) target = $region40
        $region39: #{tpu_custom_call.1} parent=11 // pred_region
          _
        $region40: #{tpu_custom_call.1} parent=11 // pred_fallthru
          _
        // Predicated region
        $region41: #{tpu_custom_call.1} parent=11 // pred_check
          %p318 = pneg %p214
        $region42: #{tpu_custom_call.1} parent=11 // pred_check_branch
          %320 = sbr.rel (%p318) target = $region44
        $region43: #{tpu_custom_call.1} parent=11 // pred_region
          _
        $region44: #{tpu_custom_call.1} parent=11 // pred_fallthru
          _
        // Predicated region
        $region45: #{tpu_custom_call.1} parent=11 // pred_check
          %p321 = pneg %p235
        $region46: #{tpu_custom_call.1} parent=11 // pred_check_branch
          %323 = sbr.rel (%p321) target = $region48
        $region47: #{tpu_custom_call.1} parent=11 // pred_region
          _
        $region48: #{tpu_custom_call.1} parent=11 // pred_fallthru
          _
        // Predicated region
        $region49: #{tpu_custom_call.1} parent=11 // pred_check
          %p324 = pneg %p256
        $region50: #{tpu_custom_call.1} parent=11 // pred_check_branch
          %326 = sbr.rel (%p324) target = $region52
        $region51: #{tpu_custom_call.1} parent=11 // pred_region
          _
        $region52: #{tpu_custom_call.1} parent=11 // pred_fallthru
          _
      $region12: #{tpu_custom_call.1} parent=5 // pred_fallthru
        _
      %p327 = scmp.lt.s32.totalorder %s20, 2
      // Predicated region
      $region53: #{tpu_custom_call.1} parent=5 // pred_check
        %p328 = pneg %p327
      $region54: #{tpu_custom_call.1} parent=5 // pred_check_branch
        %330 = sbr.rel (%p328) target = $region56
      $region55: #{tpu_custom_call.1} parent=5 // pred_region
        // Predicated region
        $region57: #{tpu_custom_call.1} parent=55 // pred_check
          %p331 = pneg %p40
        $region58: #{tpu_custom_call.1} parent=55 // pred_check_branch
          %333 = sbr.rel (%p331) target = $region60
        $region59: #{tpu_custom_call.1} parent=55 // pred_region
          %p334 = scmp.lt.s32.totalorder %s20, 1
          %s335 = scalar_select %p334, %s20, 1
          %s336 = smul.addr %s335, 2
          %s337 = smul.addr %s336, 4
          %s338 = scalar_lea.vmem %s0, %s337
        $region60: #{tpu_custom_call.1} parent=55 // pred_fallthru
          _
      $region56: #{tpu_custom_call.1} parent=5 // pred_fallthru
        _
      %p339 = scmp.le.s32.totalorder 1, %s20
      %p340 = scmp.lt.s32.totalorder %s20, 3
      %p341 = pnand %p339, %p340
      %p342 = pneg %p341
      // Predicated region
      $region61: #{tpu_custom_call.1} parent=5 // pred_check
        _
      $region62: #{tpu_custom_call.1} parent=5 // pred_check_branch
        %344 = sbr.rel (%p341) target = $region64
      $region63: #{tpu_custom_call.1} parent=5 // pred_region
        %s345 = ssub.s32 %s20, 1
        %p346 = scmp.lt.s32.totalorder %s25, 1
        %s347 = scalar_select %p346, %s25, 1
        %s348 = smul.addr %s347, 2
        %s349 = smul.addr %s348, 4
        %s350 = scalar_lea.vmem %s0, %s349
        %p351 = pneg %p46
        %p352 = pneg %p43
        %p353 = pneg %p67
        %p354 = pneg %p64
        %p355 = pneg %p88
        %p356 = pneg %p85
        %p357 = pneg %p109
        %p358 = pneg %p106
        %p359 = pneg %p130
        %p360 = pneg %p127
        %p361 = pneg %p151
        %p362 = pneg %p148
        %p363 = pneg %p172
        %p364 = pneg %p169
        %p365 = pneg %p193
        %p366 = pneg %p190
        %p367 = pneg %p214
        %p368 = pneg %p211
        %p369 = pneg %p235
        %p370 = pneg %p232
        %p371 = pneg %p256
        %p372 = pneg %p253
        %p373 = pneg %p282
        %p374 = pneg %p279
        %s375 = sand.u32 %s269, 1
        %s376 = scalar_lea.sflag [#allocation3], %s375
        %s377 = sand.u32 %s269, 1
        %s378 = smul.addr %s377, 32
        %s379 = scalar_lea.vmem [#allocation2], %s378
        %p380 = scmp.lt.s32.totalorder %s25, 1
        %s381 = scalar_select %p380, %s25, 1
        %s382 = smul.addr %s381, 2
        %s383 = smul.addr %s382, 4
        %s384 = scalar_lea.vmem %s0, %s383
        %v386 = vld [vmem:[%s384] sm:$0xff]
        %v387 = vld [vmem:[%s2] sm:$0xf]
        %389 = vset.pattern.permute.xlu0 0
        %390 = vperm.xlu0 %389, %v387
        %v391 = vpop.permute.xlu0 %390
        %v393 = vunpack.c.l.s4 839922192
        %v394 = vunpack.c.0.s8 %v393
        %v395 = vlaneseq
        %v396 = vshrl.u32 %v395, 7
        %v397 = vsub.s32 %v394, %v396
        %v398 = vrot.slane %v391, %v397
        %v400 = vmul.f32 %v386, %v398
        %v401 = vld [vmem:[%s3] sm:$0xf]
        %403 = vset.pattern.permute.xlu0 0
        %404 = vperm.xlu0 %403, %v401
        %v405 = vpop.permute.xlu0 %404
        %v407 = vunpack.c.l.s4 839922192
        %v408 = vunpack.c.0.s8 %v407
        %v409 = vlaneseq
        %v410 = vshrl.u32 %v409, 7
        %v411 = vsub.s32 %v408, %v410
        %v412 = vrot.slane %v405, %v411
        %v414 = vadd.f32 %v400, %v412
        %v415 = vmax.f32 %v414, 0.0
        %v416 = vld [vmem:[%s4] sm:$0x3]
        %v418 = vcombine.high %v415, %v415
        %v420 = vpack.c.bf16 %v415, %v415
        %v421 = vpack.c.bf16 %v418, %v418
        %vm422 = vcmask 31744
        %v424 = vsel %vm422, %v416, 0
        %vm426 = vcmask 1041408
        %v428 = vsel %vm426, %v420, 0
        %v431 = vsel %vm426, %v421, 0
        %433 = vmatprep.subr.bf16.mxu0 0
        %434 = vmatpush1.bf16.msra.mxu0 0
        %435 = vmatprep.subr.bf16.mxu0 0
        %436 = vmatpush1.bf16.msra.mxu0 0
        %437 = vmatprep.subr.bf16.mxu0 0
        %438 = vmatpush1.bf16.msra.mxu0 0
        %439 = vmatprep.subr.bf16.mxu0 0
        %440 = vmatpush1.bf16.msra.mxu0 0
        %441 = vmatprep.subr.bf16.mxu0 0
        %442 = vmatpush1.bf16.msra.mxu0 0
        %443 = vmatprep.subr.bf16.mxu0 0
        %444 = vmatpush1.bf16.msra.mxu0 0
        %445 = vmatprep.subr.bf16.mxu0 0
        %446 = vmatpush1.bf16.msra.mxu0 0
        %447 = vmatprep.subr.bf16.mxu0 %v431
        %448 = vmatpush1.bf16.msra.mxu0 %v428
        %449 = vmatprep.subr.bf16.mxu0 0
        %450 = vmatpush2.bf16.msra.mxu0 0
        %451 = vmatprep.subr.bf16.mxu0 0
        %452 = vmatpush2.bf16.msra.mxu0 0
        %453 = vmatprep.subr.bf16.mxu0 0
        %454 = vmatpush2.bf16.msra.mxu0 0
        %455 = vmatprep.subr.bf16.mxu0 0
        %456 = vmatpush2.bf16.msra.mxu0 0
        %457 = vmatprep.subr.bf16.mxu0 0
        %458 = vmatpush2.bf16.msra.mxu0 0
        %459 = vmatprep.subr.bf16.mxu0 0
        %460 = vmatpush2.bf16.msra.mxu0 0
        %461 = vmatprep.subr.bf16.mxu0 0
        %462 = vmatpush2.bf16.msra.mxu0 0
        %463 = vmatprep.subr.bf16.mxu0 0
        %464 = vmatpush2.bf16.msra.mxu0 0
        %465 = vmatprep.mubr.bf16.mxu0 0
        %466 = vmatmul.mubr.bf16.gmra.mxu0 %v424
        %v467 = vpop.f32.mrf.mxu0
        %v468 = vadd.f32 0.0, %v467
        %v469 = vpop.f32.mrf.mxu0
        %v470 = vadd.f32 0.0, %v469
        %v471 = vpop.f32.mrf.mxu0
        %v472 = vpop.f32.mrf.mxu0
        %473 = vdwg.mxu0
        %v474 = vld [vmem:[%s5] sm:$0xf]
        %476 = vset.pattern.permute.xlu0 0
        %477 = vperm.xlu0 %476, %v474
        %v478 = vpop.permute.xlu0 %477
        %v480 = vmul.f32 %v468, %v478
        %v481 = vmul.f32 %v470, %v478
        %v482 = vld [vmem:[%s6] sm:$0xf]
        %484 = vset.pattern.permute.xlu0 0
        %485 = vperm.xlu0 %484, %v482
        %v486 = vpop.permute.xlu0 %485
        %v488 = vadd.f32 %v480, %v486
        %v489 = vadd.f32 %v481, %v486
        %v490 = vmax.f32 %v488, 0.0
        %v491 = vmax.f32 %v489, 0.0
        %v492 = vld [vmem:[%s1] sm:$0xff]
        %v493 = vld [vmem:[%s1 + $0x8] sm:$0xff]
        %v494 = vld [vmem:[%s1 + $0x10] sm:$0x1]
        %v495 = vld [vmem:[%s1 + $0x18] sm:$0x1]
        %497 = vrot.lane.b32.xlu0 %v491, 17
        %v498 = vpop.permute.xlu0 %497
        %501 = vrot.lane.b32.xlu0 %v490, 17
        %v502 = vpop.permute.xlu0 %501
        %vm503 = vcmask 138240
        %v504 = vsel %vm503, %v502, %v498
        %v507 = vsel %vm503, %v498, %v502
        %v508 = vlaneseq
        %v509 = vshrl.u32 %v508, 7
        %v510 = vsub.s32 0, %v509
        %v511 = vrot.slane %v492, %v510
        %v512 = vlaneseq
        %v513 = vshrl.u32 %v512, 7
        %v514 = vsub.s32 0, %v513
        %v515 = vrot.slane %v493, %v514
        %v516 = vmul.f32 %v507, %v511
        %v517 = vmul.f32 %v504, %v515
        %518 = vrot.lane.b32.xlu0 %v491, 16
        %v519 = vpop.permute.xlu0 %518
        %521 = vrot.lane.b32.xlu0 %v490, 16
        %v522 = vpop.permute.xlu0 %521
        %vm523 = vcmask 130048
        %v524 = vsel %vm523, %v522, %v519
        %v527 = vsel %vm523, %v519, %v522
        %v528 = vlaneseq
        %v529 = vshrl.u32 %v528, 7
        %v530 = vsub.s32 1, %v529
        %v531 = vrot.slane %v492, %v530
        %v532 = vlaneseq
        %v533 = vshrl.u32 %v532, 7
        %v534 = vsub.s32 1, %v533
        %v535 = vrot.slane %v493, %v534
        %v536 = vmul.f32 %v527, %v531
        %v537 = vmul.f32 %v524, %v535
        %538 = vrot.lane.b32.xlu0 %v491, 15
        %v539 = vpop.permute.xlu0 %538
        %541 = vrot.lane.b32.xlu0 %v490, 15
        %v542 = vpop.permute.xlu0 %541
        %vm543 = vcmask 121856
        %v544 = vsel %vm543, %v542, %v539
        %v547 = vsel %vm543, %v539, %v542
        %v548 = vlaneseq
        %v549 = vshrl.u32 %v548, 7
        %v550 = vsub.s32 2, %v549
        %v551 = vrot.slane %v492, %v550
        %v552 = vlaneseq
        %v553 = vshrl.u32 %v552, 7
        %v554 = vsub.s32 2, %v553
        %v555 = vrot.slane %v493, %v554
        %v556 = vmul.f32 %v547, %v551
        %v557 = vmul.f32 %v544, %v555
        %558 = vrot.lane.b32.xlu0 %v491, 1
        %v559 = vpop.permute.xlu0 %558
        %561 = vrot.lane.b32.xlu0 %v490, 1
        %v562 = vpop.permute.xlu0 %561
        %vm563 = vcmask 7168
        %v564 = vsel %vm563, %v562, %v559
        %v567 = vsel %vm563, %v559, %v562
        %v568 = vlaneseq
        %v569 = vshrl.u32 %v568, 7
        %v570 = vsub.s32 3, %v569
        %v571 = vrot.slane %v492, %v570
        %v572 = vlaneseq
        %v573 = vshrl.u32 %v572, 7
        %v574 = vsub.s32 3, %v573
        %v575 = vrot.slane %v493, %v574
        %v576 = vmul.f32 %v567, %v571
        %v577 = vmul.f32 %v564, %v575
        %578 = vrot.lane.b32.xlu0 %v490, 127
        %v579 = vpop.permute.xlu0 %578
        %580 = vrot.lane.b32.xlu0 %v491, 127
        %v581 = vpop.permute.xlu0 %580
        %vm582 = vcmask 1039360
        %v583 = vsel %vm582, %v579, %v581
        %v587 = vsel %vm582, %v581, %v579
        %v588 = vlaneseq
        %v589 = vshrl.u32 %v588, 7
        %v590 = vsub.s32 5, %v589
        %v591 = vrot.slane %v492, %v590
        %v592 = vlaneseq
        %v593 = vshrl.u32 %v592, 7
        %v594 = vsub.s32 5, %v593
        %v595 = vrot.slane %v493, %v594
        %v596 = vmul.f32 %v583, %v591
        %v597 = vmul.f32 %v587, %v595
        %598 = vrot.lane.b32.xlu0 %v490, 113
        %v599 = vpop.permute.xlu0 %598
        %600 = vrot.lane.b32.xlu0 %v491, 113
        %v601 = vpop.permute.xlu0 %600
        %vm602 = vcmask 924672
        %v603 = vsel %vm602, %v599, %v601
        %v607 = vsel %vm602, %v601, %v599
        %v608 = vlaneseq
        %v609 = vshrl.u32 %v608, 7
        %v610 = vsub.s32 6, %v609
        %v611 = vrot.slane %v492, %v610
        %v612 = vlaneseq
        %v613 = vshrl.u32 %v612, 7
        %v614 = vsub.s32 6, %v613
        %v615 = vrot.slane %v493, %v614
        %v616 = vmul.f32 %v603, %v611
        %v617 = vmul.f32 %v607, %v615
        %618 = vrot.lane.b32.xlu0 %v490, 112
        %v619 = vpop.permute.xlu0 %618
        %620 = vrot.lane.b32.xlu0 %v491, 112
        %v621 = vpop.permute.xlu0 %620
        %vm622 = vcmask 916480
        %v623 = vsel %vm622, %v619, %v621
        %v627 = vsel %vm622, %v621, %v619
        %v628 = vlaneseq
        %v629 = vshrl.u32 %v628, 7
        %v630 = vsub.s32 7, %v629
        %v631 = vrot.slane %v492, %v630
        %v632 = vlaneseq
        %v633 = vshrl.u32 %v632, 7
        %v634 = vsub.s32 7, %v633
        %v635 = vrot.slane %v493, %v634
        %v636 = vmul.f32 %v623, %v631
        %v637 = vmul.f32 %v627, %v635
        %638 = vrot.lane.b32.xlu0 %v490, 111
        %v639 = vpop.permute.xlu0 %638
        %640 = vrot.lane.b32.xlu0 %v491, 111
        %v641 = vpop.permute.xlu0 %640
        %vm642 = vcmask 908288
        %v643 = vsel %vm642, %v639, %v641
        %v647 = vsel %vm642, %v641, %v639
        %v648 = vlaneseq
        %v649 = vshrl.u32 %v648, 7
        %v650 = vsub.s32 0, %v649
        %v651 = vrot.slane %v494, %v650
        %v652 = vlaneseq
        %v653 = vshrl.u32 %v652, 7
        %v654 = vsub.s32 0, %v653
        %v655 = vrot.slane %v495, %v654
        %v656 = vmul.f32 %v643, %v651
        %v657 = vmul.f32 %v647, %v655
        %v660 = vrot.slane %v536, 4
        %v661 = vrot.slane %v537, 4
        %v666 = vrot.slane %v576, 4
        %v667 = vrot.slane %v577, 4
        %v672 = vrot.slane %v596, 4
        %v673 = vrot.slane %v597, 4
        %v678 = vrot.slane %v636, 4
        %v679 = vrot.slane %v637, 4
        %vm682 = vcmask 1043456
        %v683 = vsel %vm682, %v516, %v660
        %v684 = vsel %vm682, %v517, %v661
        %v685 = vsel %vm682, %v556, %v666
        %v686 = vsel %vm682, %v557, %v667
        %v687 = vsel %vm682, %v490, %v672
        %v688 = vsel %vm682, %v491, %v673
        %v689 = vsel %vm682, %v616, %v678
        %v690 = vsel %vm682, %v617, %v679
        %v691 = vld [vmem:[%s7] sm:$0x3]
        %v692 = vpack.c.bf16 %v685, %v683
        %v693 = vpack.c.bf16 %v686, %v684
        %v694 = vpack.c.bf16 %v689, %v687
        %v695 = vpack.c.bf16 %v690, %v688
        %v696 = vpack.c.bf16 %v656, %v656
        %v697 = vpack.c.bf16 %v657, %v657
        %vm698 = vcmask 293888
        %v700 = vsel %vm698, %v691, 0
        %v703 = vsel %vm426, %v696, 0
        %v706 = vsel %vm426, %v697, 0
        %708 = vmatprep.subr.bf16.mxu0 0
        %709 = vmatpush1.bf16.msra.mxu0 0
        %710 = vmatprep.subr.bf16.mxu0 0
        %711 = vmatpush1.bf16.msra.mxu0 0
        %712 = vmatprep.subr.bf16.mxu0 0
        %713 = vmatpush1.bf16.msra.mxu0 0
        %714 = vmatprep.subr.bf16.mxu0 0
        %715 = vmatpush1.bf16.msra.mxu0 0
        %716 = vmatprep.subr.bf16.mxu0 0
        %717 = vmatpush1.bf16.msra.mxu0 0
        %718 = vmatprep.subr.bf16.mxu0 %v706
        %719 = vmatpush1.bf16.msra.mxu0 %v703
        %720 = vmatprep.subr.bf16.mxu0 %v695
        %721 = vmatpush1.bf16.msra.mxu0 %v694
        %722 = vmatprep.subr.bf16.mxu0 %v693
        %723 = vmatpush1.bf16.msra.mxu0 %v692
        %724 = vmatprep.subr.bf16.mxu0 0
        %725 = vmatpush2.bf16.msra.mxu0 0
        %726 = vmatprep.subr.bf16.mxu0 0
        %727 = vmatpush2.bf16.msra.mxu0 0
        %728 = vmatprep.subr.bf16.mxu0 0
        %729 = vmatpush2.bf16.msra.mxu0 0
        %730 = vmatprep.subr.bf16.mxu0 0
        %731 = vmatpush2.bf16.msra.mxu0 0
        %732 = vmatprep.subr.bf16.mxu0 0
        %733 = vmatpush2.bf16.msra.mxu0 0
        %734 = vmatprep.subr.bf16.mxu0 0
        %735 = vmatpush2.bf16.msra.mxu0 0
        %736 = vmatprep.subr.bf16.mxu0 0
        %737 = vmatpush2.bf16.msra.mxu0 0
        %738 = vmatprep.subr.bf16.mxu0 0
        %739 = vmatpush2.bf16.msra.mxu0 0
        %740 = vmatprep.mubr.bf16.mxu0 0
        %741 = vmatmul.mubr.bf16.gmra.mxu0 %v700
        %v742 = vpop.f32.mrf.mxu0
        %v743 = vadd.f32 0.0, %v742
        %v744 = vpop.f32.mrf.mxu0
        %v745 = vadd.f32 0.0, %v744
        %v746 = vpop.f32.mrf.mxu0
        %v747 = vpop.f32.mrf.mxu0
        %748 = vdwg.mxu0
        %v750 = vcombine.low %v386, %v386
        %v752 = vsel %vm682, %v743, %v750
        %v753 = vsel %vm682, %v745, %v386
        %v754 = vld [vmem:[%s8] sm:$0xff]
        %756 = vset.pattern.permute.xlu0 0
        %757 = vperm.xlu0 %756, %v754
        %v758 = vpop.permute.xlu0 %757
        %v760 = vmul.f32 %v752, %v758
        %v761 = vmul.f32 %v753, %v758
        %v762 = vld [vmem:[%s9] sm:$0xff]
        %764 = vset.pattern.permute.xlu0 0
        %765 = vperm.xlu0 %764, %v762
        %v766 = vpop.permute.xlu0 %765
        %v768 = vadd.f32 %v760, %v766
        %v769 = vadd.f32 %v761, %v766
        %v770 = vmax.f32 %v768, 0.0
        %v771 = vmax.f32 %v769, 0.0
        %v772 = vld [vmem:[%s10] sm:$0xf]
        %v773 = vld [vmem:[%s10 + $0x4] sm:$0xf]
        %v774 = vpack.c.bf16 %v770, %v770
        %v775 = vpack.c.bf16 %v771, %v771
        %v778 = vunpack.c.l.b16 %v772
        %v779 = vunpack.c.l.b16 %v773
        %v780 = vpack.c.b16 %v779, %v778
        %vm781 = vcmask 64512
        %v783 = vsel %vm781, %v780, 0
        %v786 = vsel %vm682, %v774, 0
        %v789 = vsel %vm682, %v775, 0
        %791 = vmatprep.subr.bf16.mxu0 0
        %792 = vmatpush1.bf16.msra.mxu0 0
        %793 = vmatprep.subr.bf16.mxu0 0
        %794 = vmatpush1.bf16.msra.mxu0 0
        %795 = vmatprep.subr.bf16.mxu0 0
        %796 = vmatpush1.bf16.msra.mxu0 0
        %797 = vmatprep.subr.bf16.mxu0 0
        %798 = vmatpush1.bf16.msra.mxu0 0
        %799 = vmatprep.subr.bf16.mxu0 0
        %800 = vmatpush1.bf16.msra.mxu0 0
        %801 = vmatprep.subr.bf16.mxu0 0
        %802 = vmatpush1.bf16.msra.mxu0 0
        %803 = vmatprep.subr.bf16.mxu0 0
        %804 = vmatpush1.bf16.msra.mxu0 0
        %805 = vmatprep.subr.bf16.mxu0 %v789
        %806 = vmatpush1.bf16.msra.mxu0 %v786
        %807 = vmatprep.subr.bf16.mxu0 0
        %808 = vmatpush2.bf16.msra.mxu0 0
        %809 = vmatprep.subr.bf16.mxu0 0
        %810 = vmatpush2.bf16.msra.mxu0 0
        %811 = vmatprep.subr.bf16.mxu0 0
        %812 = vmatpush2.bf16.msra.mxu0 0
        %813 = vmatprep.subr.bf16.mxu0 0
        %814 = vmatpush2.bf16.msra.mxu0 0
        %815 = vmatprep.subr.bf16.mxu0 0
        %816 = vmatpush2.bf16.msra.mxu0 0
        %817 = vmatprep.subr.bf16.mxu0 0
        %818 = vmatpush2.bf16.msra.mxu0 0
        %819 = vmatprep.subr.bf16.mxu0 0
        %820 = vmatpush2.bf16.msra.mxu0 0
        %821 = vmatprep.subr.bf16.mxu0 0
        %822 = vmatpush2.bf16.msra.mxu0 0
        %823 = vmatprep.mubr.bf16.mxu0 0
        %824 = vmatmul.mubr.bf16.gmra.mxu0 %v783
        %v825 = vpop.f32.mrf.mxu0
        %v826 = vadd.f32 0.0, %v825
        %v827 = vpop.f32.mrf.mxu0
        %v828 = vadd.f32 0.0, %v827
        %v829 = vpop.f32.mrf.mxu0
        %v830 = vadd.f32 0.0, %v829
        %v831 = vpop.f32.mrf.mxu0
        %v832 = vadd.f32 0.0, %v831
        %833 = vdwg.mxu0
        %834 = vst [vmem:[%s379] sm:$0xff] %v826
        %835 = vst [vmem:[%s379 + $0x8] sm:$0xff] %v828
        %836 = vst [vmem:[%s379 + $0x10] sm:$0xff] %v830
        %837 = vst [vmem:[%s379 + $0x18] sm:$0xff] %v832
        %s838 = sand.u32 %s269, 1
        %s839 = scalar_lea.sflag [#allocation3], %s838
        %s840 = sand.u32 %s269, 1
        %s841 = smul.addr %s840, 32
        %s842 = scalar_lea.vmem [#allocation2], %s841
        // Predicated region
        $region65: #{tpu_custom_call.1} parent=63 // pred_check
          %p843 = pneg %p279
        $region66: #{tpu_custom_call.1} parent=63 // pred_check_branch
          %845 = sbr.rel (%p843) target = $region68
        $region67: #{tpu_custom_call.1} parent=63 // pred_region
          %s847 = ssub.s32 512, 512
          %848 = vsyncadd %s839, %s847
          %s849 = smul.addr %s25, 4
          %s850 = smul.addr %s849, 128
          %s851 = scalar_lea.hbm %s11, %s850
          %s852 = sshll.u32 %s842, 4
          %s853 = int_to_ptr.vmem [resolvable:$true] %s852
          %858 = dma.vmem_to_hbm [thread:$0]  %s853, 512, %s851, %s839, 256, 256, 16
        $region68: #{tpu_custom_call.1} parent=63 // pred_fallthru
          _
      $region64: #{tpu_custom_call.1} parent=5 // pred_fallthru
        _
      %p859 = scmp.le.s32.totalorder 2, %s20
      // Predicated region
      $region69: #{tpu_custom_call.1} parent=5 // pred_check
        %p860 = pneg %p859
      $region70: #{tpu_custom_call.1} parent=5 // pred_check_branch
        %862 = sbr.rel (%p860) target = $region72
      $region71: #{tpu_custom_call.1} parent=5 // pred_region
        %s863 = ssub.s32 %s20, 2
        // Predicated region
        $region73: #{tpu_custom_call.1} parent=71 // pred_check
          %p864 = pneg %p285
        $region74: #{tpu_custom_call.1} parent=71 // pred_check_branch
          %866 = sbr.rel (%p864) target = $region76
        $region75: #{tpu_custom_call.1} parent=71 // pred_region
          %s867 = sand.u32 %s270, 1
          %s868 = scalar_lea.sflag [#allocation3], %s867
          %s869 = sand.u32 %s270, 1
          %s870 = smul.addr %s869, 32
          %s871 = scalar_lea.vmem [#allocation2], %s870
          %872 = dma.done %s868, 512
        $region76: #{tpu_custom_call.1} parent=71 // pred_fallthru
          _
      $region72: #{tpu_custom_call.1} parent=5 // pred_fallthru
        _
    $region6: #{tpu_custom_call.1} parent=1 // loop_footer
      %s24 = sadd.s32 1, %s20
    $region7: #{tpu_custom_call.1} parent=1 // loop_footer_branch
      %19 = sbr.rel target = $region3
    $region8: #{tpu_custom_call.1} parent=1 // loop_exit
      _
    %873 = vsyncpa [#allocation3], 1
    %s874 = scalar_lea.sflag [#allocation3], 1
    %875 = vsyncpa %s874, 1

</llo_original>
